<compile_context>
chip_gen: v6e
topology: v6e:2x2x1
jax: 0.10.0
libtpu: 0.0.40
codegen_flags: <defaults>
</compile_context>

<pallas_src>
import jax
import jax.numpy as jnp
from jax.experimental import pallas as pl
from jax.experimental.pallas import tpu as pltpu

BN_EPS = 1e-3


def _dwconv_bn_relu_kernel(x_ref, p_ref, o_ref):
    # x block: (Rt, HWt).  p block: (Rt, 2) f32 = [scale | shift] per row.
    x = x_ref[...].astype(jnp.float32)
    scale = p_ref[:, 0:1]
    shift = p_ref[:, 1:2]
    y = x * scale + shift
    o_ref[...] = jnp.maximum(y, 0.0).astype(o_ref.dtype)


def _round_up(a, m):
    return (a + m - 1) // m * m


def _vmem_budget():
    """Returns (target_tile_bytes, vmem_limit_bytes), generation-aware."""
    try:
        vmem = int(getattr(pltpu.get_tpu_info(), "vmem_capacity_bytes",
                           64 * 1024 * 1024))
    except Exception:  # pragma: no cover - conservative fallback
        vmem = 64 * 1024 * 1024
    if vmem >= 100 * 1024 * 1024:
        # v5e / v6e: 128 MiB physical VMEM; raise the scoped limit, stream big blocks.
        return 8 * 1024 * 1024, 80 * 1024 * 1024
    # v7x (64 MiB physical) or unknown: smaller absolute tiles, headroom under 64 MiB.
    return 4 * 1024 * 1024, 44 * 1024 * 1024


def _pick_tiles(num_rows, hw, itemsize, target_tile_bytes):
    """Choose (Rt, HWt): dtype-aware sublane alignment, lane-dense, ~target bytes."""
    sub = max(8, 32 // itemsize)  # f32 -> 8, bf16 -> 16, int8/fp8 -> 32

    rows_fit = target_tile_bytes // (max(hw, 128) * itemsize)
    if rows_fit >= sub:
        # All of HW fits in the lane direction: block spans full HW, tile rows.
        hwt = hw
        rt_cap = (rows_fit // sub) * sub
        rt = num_rows if num_rows <= rt_cap else rt_cap
    else:
        # HW alone exceeds the byte target: minimal row tile, tile the lane dim.
        rt = num_rows if num_rows < sub else sub
        hwt_cap = (target_tile_bytes // (rt * itemsize)) // 128 * 128
        hwt = hw if hw <= hwt_cap else max(128, hwt_cap)

    # v7x shards "parallel" grid axes over 2 TensorCores; make sure the grid has
    # >= 2 steps whenever the problem is splittable (harmless on 1-TC chips).
    if pl.cdiv(num_rows, rt) * pl.cdiv(hw, hwt) < 2:
        if hwt >= 256:
            hwt = _round_up(hwt // 2, 128)
        elif rt >= 2 * sub:
            rt = _round_up(rt // 2, sub)
        elif rt > sub:
            rt = sub
    return rt, hwt


@jax.jit
def conv2d_depthwise_bn_relu(x, weight, gamma, beta, running_mean, running_var):
    """x: (N, C, H, W); weight: (C, 1, 1, 1) depthwise 1x1 conv (groups=C, no bias)."""
    N, C, H, W = x.shape
    HW = H * W
    R = N * C

    # Fold conv weight + BatchNorm into a per-channel affine (f32 params).
    w = weight.reshape(C).astype(jnp.float32)
    g = gamma.astype(jnp.float32)
    b = beta.astype(jnp.float32)
    m = running_mean.astype(jnp.float32)
    v = running_var.astype(jnp.float32)
    inv_std = jax.lax.rsqrt(v + BN_EPS)
    scale_c = w * g * inv_std                  # multiplies x
    shift_c = b - m * g * inv_std              # added after scaling

    # Row-major (N*C, HW) slab (free reshape) and packed per-row params (R, 2).
    x2 = x.reshape(R, HW)
    params = jnp.tile(jnp.stack([scale_c, shift_c], axis=-1), (N, 1))

    itemsize = jnp.dtype(x.dtype).itemsize
    target_tile_bytes, vmem_limit = _vmem_budget()
    Rt, HWt = _pick_tiles(R, HW, itemsize, target_tile_bytes)

    # cdiv grid over the UNPADDED slab: partial edge blocks are masked by Pallas
    # (elementwise op -> garbage in out-of-bounds lanes is never written back).
    grid = (pl.cdiv(R, Rt), pl.cdiv(HW, HWt))
    data_spec = pl.BlockSpec((Rt, HWt), lambda i, j: (i, j))
    param_spec = pl.BlockSpec((Rt, 2), lambda i, j: (i, 0))

    out = pl.pallas_call(
        _dwconv_bn_relu_kernel,
        out_shape=jax.ShapeDtypeStruct((R, HW), x.dtype),
        grid_spec=pltpu.PrefetchScalarGridSpec(
            num_scalar_prefetch=0,
            grid=grid,
            in_specs=[data_spec, param_spec],
            out_specs=data_spec,
        ),
        compiler_params=pltpu.CompilerParams(
            dimension_semantics=("parallel", "parallel"),
            vmem_limit_bytes=vmem_limit,
        ),
        cost_estimate=pl.CostEstimate(
            flops=2 * R * HW,
            transcendentals=0,
            bytes_accessed=2 * R * HW * itemsize + R * 2 * 4,
        ),
    )(x2, params)

    return out.reshape(N, C, H, W)


def _reference(x, weight, gamma, beta, running_mean, running_var):
    C = x.shape[1]
    conv = x * weight.reshape(1, C, 1, 1)
    bn = (conv - running_mean.reshape(1, C, 1, 1)) / jnp.sqrt(
        running_var.reshape(1, C, 1, 1) + BN_EPS
    ) * gamma.reshape(1, C, 1, 1) + beta.reshape(1, C, 1, 1)
    return jnp.maximum(bn, 0.0)


def _run_check(key, N, C, H, W):
    kx, kw, kg, kb, km, kv = jax.random.split(key, 6)
    x = jax.random.normal(kx, (N, C, H, W), dtype=jnp.float32)
    weight = jax.random.normal(kw, (C, 1, 1, 1), dtype=jnp.float32)
    gamma = 1.0 + 0.1 * jax.random.normal(kg, (C,), dtype=jnp.float32)
    beta = 0.1 * jax.random.normal(kb, (C,), dtype=jnp.float32)
    running_mean = 0.1 * jax.random.normal(km, (C,), dtype=jnp.float32)
    running_var = jnp.abs(1.0 + 0.1 * jax.random.normal(kv, (C,), dtype=jnp.float32))

    out = conv2d_depthwise_bn_relu(x, weight, gamma, beta, running_mean, running_var)
    out = jax.block_until_ready(out)
    ref = _reference(x, weight, gamma, beta, running_mean, running_var)
    assert out.shape == ref.shape, "shape mismatch vs reference"
    assert jnp.allclose(out, ref, atol=1e-5, rtol=1e-5), "mismatch vs reference"


if __name__ == "__main__":
    key = jax.random.PRNGKey(0)
    k1, k2 = jax.random.split(key)

    # Primary small case matching the module (in_channels == out_channels == 4).
    _run_check(k1, N=2, C=4, H=16, W=16)
    # Odd, non-tile-aligned case: exercises the masked partial edge blocks.
    _run_check(k2, N=3, C=7, H=17, W=19)

    # TODO(synk): BatchNorm training-mode (batch-statistics + running-stat updates)
    # not implemented; kernel uses running stats (eval semantics).
    print("KERNEL_OK")
</pallas_src>

<mosaic_0001>
module attributes {stable_mosaic.version = 11 : i64} {
  func.func @_dwconv_bn_relu_kernel(%arg0: i32, %arg1: i32, %arg2: memref<8x128xf32, #tpu.memory_space<vmem>>, %arg3: memref<8x2xf32, #tpu.memory_space<vmem>>, %arg4: memref<8x128xf32, #tpu.memory_space<vmem>>) attributes {dimension_semantics = [#tpu.dimension_semantics<parallel>, #tpu.dimension_semantics<parallel>], iteration_bounds = array<i64: 1, 2>, scalar_prefetch = 0 : i64, scratch_operands = 0 : i64, tpu.core_type = #tpu.core_type<tc>, window_params = [{transform_indices = @transform_0, window_bounds = array<i64: 8, 128>}, {transform_indices = @transform_1, window_bounds = array<i64: 8, 2>}, {transform_indices = @transform_2, window_bounds = array<i64: 8, 128>}]} {
    %c0 = arith.constant 0 : index
    %c0_0 = arith.constant 0 : index
    %0 = vector.load %arg2[%c0, %c0_0] : memref<8x128xf32, #tpu.memory_space<vmem>>, vector<8x128xf32>
    %c0_1 = arith.constant 0 : index
    %c0_2 = arith.constant 0 : index
    %1 = vector.load %arg3[%c0_1, %c0_2] : memref<8x2xf32, #tpu.memory_space<vmem>>, vector<8x1xf32>
    %c0_3 = arith.constant 0 : index
    %c1 = arith.constant 1 : index
    %2 = vector.load %arg3[%c0_3, %c1] : memref<8x2xf32, #tpu.memory_space<vmem>>, vector<8x1xf32>
    %3 = vector.broadcast %1 : vector<8x1xf32> to vector<8x128xf32>
    %4 = arith.mulf %0, %3 : vector<8x128xf32>
    %5 = vector.broadcast %2 : vector<8x1xf32> to vector<8x128xf32>
    %6 = arith.addf %4, %5 : vector<8x128xf32>
    %cst = arith.constant 0.000000e+00 : f32
    %7 = vector.broadcast %cst : f32 to vector<8x128xf32>
    %8 = arith.maximumf %6, %7 : vector<8x128xf32>
    %c0_4 = arith.constant 0 : index
    %c0_5 = arith.constant 0 : index
    %9 = vector.load %arg4[%c0_4, %c0_5] : memref<8x128xf32, #tpu.memory_space<vmem>>, vector<8x128xf32>
    tpu.vector_store %arg4[%c0_4, %c0_5], %8 {strides = array<i32>} : memref<8x128xf32, #tpu.memory_space<vmem>>, vector<8x128xf32>,
    return
  }
  func.func @transform_0(%arg0: i32, %arg1: i32) -> (i32, i32) {
    %c0_i32 = arith.constant 0 : i32
    return %arg0, %arg1 : i32, i32
  }
  func.func @transform_1(%arg0: i32, %arg1: i32) -> (i32, i32) {
    %c0_i32 = arith.constant 0 : i32
    %c0_i32_0 = arith.constant 0 : i32
    return %arg0, %c0_i32 : i32, i32
  }
  func.func @transform_2(%arg0: i32, %arg1: i32) -> (i32, i32) {
    %c0_i32 = arith.constant 0 : i32
    return %arg0, %arg1 : i32, i32
  }
}

</mosaic_0001>

<llo_original>
// kernel: conv2d_depthwise_bn_relu.1
$region0: #{conv2d_depthwise_bn_relu.1}
  #allocation0 [shape = 'u32[]', space=smem, size = 0x4, offset = 0x4, fixed_abs, tag = 'smem constant byte address 0x4 - core index']
  #allocation1 [shape = 'u32[144,128]{1,0:T(1,128)}', space=vmem, size = 0x12000, scoped, tag = 'internal scratch']
  %s0 = inlined_call_operand.vmem [shape: f32[8,256], index: 0, kind: input, shape index: {}]
  %s1 = inlined_call_operand.vmem [shape: f32[8,2], index: 1, kind: input, shape index: {}]
  %s2 = inlined_call_operand.vmem [shape: f32[8,256], index: 2, kind: output, shape index: {}]
  %s3 = sld [smem:[#allocation0]]
  $region41: #{conv2d_depthwise_bn_relu.1} parent=0
    _
  %s5 = ssub.s32 1, %s3
  %s6 = scalar_select 0, %s5, %s3
  loop: start=0, step=1, limit=4
  $region2: #{conv2d_depthwise_bn_relu.1} parent=0 // loop_pre_header
    _
  $region3: #{conv2d_depthwise_bn_relu.1} parent=0 // loop_header
    %s8 = sphi 0, %s12
    %p9 = scmp.ge.s32.totalorder %s8, 4
    %s15 = sphi 0, %s27
    %s16 = sphi 0, %s23
    %s17 = sphi 0, %s15
    %s18 = sphi 0, %s16
    %s19 = sphi 0, %s17
    %s20 = sphi 0, %s18
    %s32 = sphi 0, %s34
    %s35 = sphi 0, %s32
    %s36 = sphi 0, %s35
    %s52 = sphi 0, %s36
    %s58 = sphi 0, %s60
    %s61 = sphi 0, %s58
    %s62 = sphi 0, %s61
    %s78 = sphi 0, %s62
    %s86 = sphi 0, %s88
    %s89 = sphi 0, %s86
    %s90 = sphi 0, %s89
    %s106 = sphi 0, %s90
  $region4: #{conv2d_depthwise_bn_relu.1} parent=0 // loop_header_branch
    %11 = sbr.rel (%p9) target = $region8
  $region5: #{conv2d_depthwise_bn_relu.1} parent=0 // loop_body
    %s13 = ssub.s32 %s8, 1
    %s14 = ssub.s32 %s8, 2
    %s21 = sadd.s32 1, %s16
    %p22 = scmp.ge.s32.totalorder %s21, 2
    %s23 = scalar_select %p22, 0, %s21
    %s24 = sadd.s32 1, %s15
    %s25 = scalar_select %p22, %s24, %s15
    %p26 = scmp.ge.s32.totalorder %s25, 1
    %s27 = scalar_select %p26, 0, %s25
    %s28 = ssub.s32 %s15, %s27
    %s29 = ssub.s32 %s16, %s23
    %s30 = sor.u32 %s28, %s29
    %p31 = scmp.eq.s32.totalorder %s30, 0
    %s33 = sadd.s32 %s32, 1
    %s34 = scalar_select %p31, %s32, %s33
    %p37 = pneg %p31
    %p38 = scmp.eq.s32.totalorder %s8, 1
    %p39 = por %p37, %p38
    %p40 = scmp.ne.s32.totalorder %s32, %s35
    %p41 = scmp.eq.s32.totalorder %s8, 0
    %p42 = por %p40, %p41
    %p43 = scmp.ne.s32.totalorder %s32, %s35
    %p44 = scmp.eq.s32.totalorder %s13, 1
    %p45 = por %p43, %p44
    %p46 = scmp.ne.s32.totalorder %s35, %s36
    %p47 = scmp.eq.s32.totalorder %s13, 0
    %p48 = por %p46, %p47
    %p49 = scmp.ne.s32.totalorder %s35, %s36
    %p50 = scmp.eq.s32.totalorder %s14, 1
    %p51 = por %p49, %p50
    %p53 = scmp.ne.s32.totalorder %s36, %s52
    %p54 = scmp.eq.s32.totalorder %s14, 0
    %p55 = por %p53, %p54
    %s56 = ssub.s32 %s15, %s27
    %p57 = scmp.eq.s32.totalorder %s56, 0
    %s59 = sadd.s32 %s58, 1
    %s60 = scalar_select %p57, %s58, %s59
    %p63 = pneg %p57
    %p64 = scmp.eq.s32.totalorder %s8, 1
    %p65 = por %p63, %p64
    %p66 = scmp.ne.s32.totalorder %s58, %s61
    %p67 = scmp.eq.s32.totalorder %s8, 0
    %p68 = por %p66, %p67
    %p69 = scmp.ne.s32.totalorder %s58, %s61
    %p70 = scmp.eq.s32.totalorder %s13, 1
    %p71 = por %p69, %p70
    %p72 = scmp.ne.s32.totalorder %s61, %s62
    %p73 = scmp.eq.s32.totalorder %s13, 0
    %p74 = por %p72, %p73
    %p75 = scmp.ne.s32.totalorder %s61, %s62
    %p76 = scmp.eq.s32.totalorder %s14, 1
    %p77 = por %p75, %p76
    %p79 = scmp.ne.s32.totalorder %s62, %s78
    %p80 = scmp.eq.s32.totalorder %s14, 0
    %p81 = por %p79, %p80
    %s82 = ssub.s32 %s15, %s27
    %s83 = ssub.s32 %s16, %s23
    %s84 = sor.u32 %s82, %s83
    %p85 = scmp.eq.s32.totalorder %s84, 0
    %s87 = sadd.s32 %s86, 1
    %s88 = scalar_select %p85, %s86, %s87
    %p91 = pneg %p85
    %p92 = scmp.eq.s32.totalorder %s8, 1
    %p93 = por %p91, %p92
    %p94 = scmp.ne.s32.totalorder %s86, %s89
    %p95 = scmp.eq.s32.totalorder %s8, 0
    %p96 = por %p94, %p95
    %p97 = scmp.ne.s32.totalorder %s86, %s89
    %p98 = scmp.eq.s32.totalorder %s13, 1
    %p99 = por %p97, %p98
    %p100 = scmp.ne.s32.totalorder %s89, %s90
    %p101 = scmp.eq.s32.totalorder %s13, 0
    %p102 = por %p100, %p101
    %p103 = scmp.ne.s32.totalorder %s89, %s90
    %p104 = scmp.eq.s32.totalorder %s14, 1
    %p105 = por %p103, %p104
    %p107 = scmp.ne.s32.totalorder %s90, %s106
    %p108 = scmp.eq.s32.totalorder %s14, 0
    %p109 = por %p107, %p108
    %p110 = scmp.le.s32.totalorder 1, %s8
    %p111 = scmp.lt.s32.totalorder %s8, 3
    %p112 = pnand %p110, %p111
    %p113 = pneg %p112
    // Predicated region
    $region9: #{conv2d_depthwise_bn_relu.1} parent=5 // pred_check
      _
    $region10: #{conv2d_depthwise_bn_relu.1} parent=5 // pred_check_branch
      %115 = sbr.rel (%p112) target = $region12
    $region11: #{conv2d_depthwise_bn_relu.1} parent=5 // pred_region
      %s116 = ssub.s32 %s8, 1
      // Predicated region
      $region13: #{conv2d_depthwise_bn_relu.1} parent=11 // pred_check
        %p117 = pneg %p74
      $region14: #{conv2d_depthwise_bn_relu.1} parent=11 // pred_check_branch
        %119 = sbr.rel (%p117) target = $region16
      $region15: #{conv2d_depthwise_bn_relu.1} parent=11 // pred_region
        %p120 = scmp.lt.s32.totalorder %s17, 0
        %s121 = scalar_select %p120, %s17, 0
        %s122 = smul.addr %s121, 8
        %s123 = scalar_lea.vmem %s1, %s122
      $region16: #{conv2d_depthwise_bn_relu.1} parent=11 // pred_fallthru
        _
    $region12: #{conv2d_depthwise_bn_relu.1} parent=5 // pred_fallthru
      _
    %p124 = scmp.lt.s32.totalorder %s8, 2
    // Predicated region
    $region17: #{conv2d_depthwise_bn_relu.1} parent=5 // pred_check
      %p125 = pneg %p124
    $region18: #{conv2d_depthwise_bn_relu.1} parent=5 // pred_check_branch
      %127 = sbr.rel (%p125) target = $region20
    $region19: #{conv2d_depthwise_bn_relu.1} parent=5 // pred_region
      // Predicated region
      $region21: #{conv2d_depthwise_bn_relu.1} parent=19 // pred_check
        %p128 = pneg %p42
      $region22: #{conv2d_depthwise_bn_relu.1} parent=19 // pred_check_branch
        %130 = sbr.rel (%p128) target = $region24
      $region23: #{conv2d_depthwise_bn_relu.1} parent=19 // pred_region
        %p131 = scmp.lt.s32.totalorder %s15, 0
        %s132 = scalar_select %p131, %s15, 0
        %p133 = scmp.lt.s32.totalorder %s16, 1
        %s134 = scalar_select %p133, %s16, 1
        %s135 = smul.addr %s132, 2
        %s136 = sadd.s32 %s134, %s135
        %s137 = smul.addr %s136, 8
        %s138 = scalar_lea.vmem %s0, %s137
      $region24: #{conv2d_depthwise_bn_relu.1} parent=19 // pred_fallthru
        _
    $region20: #{conv2d_depthwise_bn_relu.1} parent=5 // pred_fallthru
      _
    %p139 = scmp.le.s32.totalorder 1, %s8
    %p140 = scmp.lt.s32.totalorder %s8, 3
    %p141 = pnand %p139, %p140
    %p142 = pneg %p141
    // Predicated region
    $region25: #{conv2d_depthwise_bn_relu.1} parent=5 // pred_check
      _
    $region26: #{conv2d_depthwise_bn_relu.1} parent=5 // pred_check_branch
      %144 = sbr.rel (%p141) target = $region28
    $region27: #{conv2d_depthwise_bn_relu.1} parent=5 // pred_region
      %s145 = ssub.s32 %s8, 1
      %p146 = scmp.lt.s32.totalorder %s17, 0
      %s147 = scalar_select %p146, %s17, 0
      %p148 = scmp.lt.s32.totalorder %s18, 1
      %s149 = scalar_select %p148, %s18, 1
      %s150 = smul.addr %s147, 2
      %s151 = sadd.s32 %s149, %s150
      %s152 = smul.addr %s151, 8
      %s153 = scalar_lea.vmem %s0, %s152
      %p154 = pneg %p48
      %p155 = pneg %p45
      %p156 = scmp.lt.s32.totalorder %s17, 0
      %s157 = scalar_select %p156, %s17, 0
      %s158 = smul.addr %s157, 8
      %s159 = scalar_lea.vmem %s1, %s158
      %p160 = pneg %p74
      %p161 = pneg %p71
      %p162 = pneg %p102
      %p163 = pneg %p99
      %p164 = scmp.lt.s32.totalorder %s17, 0
      %s165 = scalar_select %p164, %s17, 0
      %p166 = scmp.lt.s32.totalorder %s18, 1
      %s167 = scalar_select %p166, %s18, 1
      %s168 = smul.addr %s165, 2
      %s169 = sadd.s32 %s167, %s168
      %s170 = smul.addr %s169, 8
      %s171 = scalar_lea.vmem %s2, %s170
      %p172 = scmp.lt.s32.totalorder %s17, 0
      %s173 = scalar_select %p172, %s17, 0
      %p174 = scmp.lt.s32.totalorder %s18, 1
      %s175 = scalar_select %p174, %s18, 1
      %s176 = smul.addr %s173, 2
      %s177 = sadd.s32 %s175, %s176
      %s178 = smul.addr %s177, 8
      %s179 = scalar_lea.vmem %s0, %s178
      %p180 = scmp.lt.s32.totalorder %s17, 0
      %s181 = scalar_select %p180, %s17, 0
      %s182 = smul.addr %s181, 8
      %s183 = scalar_lea.vmem %s1, %s182
      %p184 = scmp.lt.s32.totalorder %s17, 0
      %s185 = scalar_select %p184, %s17, 0
      %p186 = scmp.lt.s32.totalorder %s18, 1
      %s187 = scalar_select %p186, %s18, 1
      %s188 = smul.addr %s185, 2
      %s189 = sadd.s32 %s187, %s188
      %s190 = smul.addr %s189, 8
      %s191 = scalar_lea.vmem %s2, %s190
      %v192 = vld [vmem:[%s179] sm:$0xff]
      %v193 = vld [vmem:[%s183] sm:$0xff]
      %195 = vset.pattern.permute.xlu0 0
      %196 = vperm.xlu0 %195, %v193
      %v197 = vpop.permute.xlu0 %196
      %v199 = vmul.f32 %v192, %v197
      %200 = vset.pattern.permute.xlu0 1
      %201 = vperm.xlu0 %200, %v193
      %v202 = vpop.permute.xlu0 %201
      %v204 = vadd.f32 %v199, %v202
      %v205 = vmax.f32 %v204, 0.0
      %206 = vst [vmem:[%s191] sm:$0xff] %v205
      %p207 = scmp.lt.s32.totalorder %s17, 0
      %s208 = scalar_select %p207, %s17, 0
      %p209 = scmp.lt.s32.totalorder %s18, 1
      %s210 = scalar_select %p209, %s18, 1
      %s211 = smul.addr %s208, 2
      %s212 = sadd.s32 %s210, %s211
      %s213 = smul.addr %s212, 8
      %s214 = scalar_lea.vmem %s2, %s213
      // Predicated region
      $region29: #{conv2d_depthwise_bn_relu.1} parent=27 // pred_check
        %p215 = pneg %p99
      $region30: #{conv2d_depthwise_bn_relu.1} parent=27 // pred_check_branch
        %217 = sbr.rel (%p215) target = $region32
      $region31: #{conv2d_depthwise_bn_relu.1} parent=27 // pred_region
        _
      $region32: #{conv2d_depthwise_bn_relu.1} parent=27 // pred_fallthru
        _
    $region28: #{conv2d_depthwise_bn_relu.1} parent=5 // pred_fallthru
      _
    %p218 = scmp.le.s32.totalorder 2, %s8
    // Predicated region
    $region33: #{conv2d_depthwise_bn_relu.1} parent=5 // pred_check
      %p219 = pneg %p218
    $region34: #{conv2d_depthwise_bn_relu.1} parent=5 // pred_check_branch
      %221 = sbr.rel (%p219) target = $region36
    $region35: #{conv2d_depthwise_bn_relu.1} parent=5 // pred_region
      %s222 = ssub.s32 %s8, 2
      // Predicated region
      $region37: #{conv2d_depthwise_bn_relu.1} parent=35 // pred_check
        %p223 = pneg %p105
      $region38: #{conv2d_depthwise_bn_relu.1} parent=35 // pred_check_branch
        %225 = sbr.rel (%p223) target = $region40
      $region39: #{conv2d_depthwise_bn_relu.1} parent=35 // pred_region
        %p226 = scmp.lt.s32.totalorder %s19, 0
        %s227 = scalar_select %p226, %s19, 0
        %p228 = scmp.lt.s32.totalorder %s20, 1
        %s229 = scalar_select %p228, %s20, 1
        %s230 = smul.addr %s227, 2
        %s231 = sadd.s32 %s229, %s230
        %s232 = smul.addr %s231, 8
        %s233 = scalar_lea.vmem %s2, %s232
      $region40: #{conv2d_depthwise_bn_relu.1} parent=35 // pred_fallthru
        _
    $region36: #{conv2d_depthwise_bn_relu.1} parent=5 // pred_fallthru
      _
  $region6: #{conv2d_depthwise_bn_relu.1} parent=0 // loop_footer
    %s12 = sadd.s32 1, %s8
  $region7: #{conv2d_depthwise_bn_relu.1} parent=0 // loop_footer_branch
    %7 = sbr.rel target = $region3
  $region8: #{conv2d_depthwise_bn_relu.1} parent=0 // loop_exit
    _

</llo_original>
